<compile_context>
chip_gen: v7x
topology: tpu7x:2x2x1
jax: 0.10.0
libtpu: 0.0.40
codegen_flags: <defaults>
</compile_context>

<pallas_src>
import jax
import jax.numpy as jnp
from jax.experimental import pallas as pl
from jax.experimental.pallas import tpu as pltpu


# ~2 MiB per tile: with double-buffered input + output that is ~8 MiB live,
# comfortably inside v5e's 16 MiB default scoped VMEM (and v6e/v7x's 32 MiB).
_TARGET_TILE_BYTES = 2 * 1024 * 1024


def _copy_kernel(x_ref, o_ref):
    # Empty nn.Sequential() == identity: pass the VMEM tile straight through.
    o_ref[...] = x_ref[...]


def _choose_lane_dense_layout(total: int, itemsize: int):
    """Pick a (rows, cols, block_rows) 2-D presentation of a flat buffer.

    cols is a large multiple of 128 (lane-dense, unmasked vst); block_rows is
    either the full row extent or a multiple of 8 (sublane-dense) sized to
    ~_TARGET_TILE_BYTES.  Returns None if `total` has no multiple-of-128
    divisor.
    """
    cols = None
    for c in (2048, 1024, 512, 256, 128):
        if total % c == 0:
            cols = c
            break
    if cols is None:
        return None
    rows = total // cols
    max_rows_per_tile = max(8, _TARGET_TILE_BYTES // (cols * itemsize))
    if rows <= max_rows_per_tile:
        block_rows = rows                      # full extent -> always legal
    else:
        block_rows = (max_rows_per_tile // 8) * 8   # sublane-dense tile
    return rows, cols, block_rows


def _pallas_identity_2d(x2d: jax.Array, block_rows: int) -> jax.Array:
    rows, cols = x2d.shape
    grid = (pl.cdiv(rows, block_rows),)
    return pl.pallas_call(
        _copy_kernel,
        out_shape=jax.ShapeDtypeStruct((rows, cols), x2d.dtype),
        grid=grid,
        in_specs=[pl.BlockSpec((block_rows, cols), lambda i: (i, 0))],
        out_specs=pl.BlockSpec((block_rows, cols), lambda i: (i, 0)),
        input_output_aliases={0: 0},
        compiler_params=pltpu.CompilerParams(
            dimension_semantics=("parallel",)
        ),
    )(x2d)


def discriminator_block_pallas(x: jax.Array) -> jax.Array:
    """Materializing identity (Pallas copy kernel) with lane-dense tiling."""
    shape = x.shape
    total = 1
    for d in shape:
        total *= d
    itemsize = jnp.dtype(x.dtype).itemsize

    layout = _choose_lane_dense_layout(total, itemsize)
    if layout is not None:
        rows, cols, block_rows = layout
        x2d = x.reshape(rows, cols)            # row-major flatten, order preserved
        out2d = _pallas_identity_2d(x2d, block_rows)
        return out2d.reshape(shape)

    # Fallback for element counts not divisible by 128: keep the original last
    # dim as the (full-extent) lane axis; tile leading rows sublane-densely.
    cols = shape[-1] if len(shape) >= 1 else 1
    rows = total // cols
    x2d = x.reshape(rows, cols)
    if rows * cols * itemsize <= _TARGET_TILE_BYTES:
        block_rows = rows
    else:
        block_rows = max(8, (_TARGET_TILE_BYTES // (cols * itemsize) // 8) * 8)
    out2d = _pallas_identity_2d(x2d, block_rows)
    return out2d.reshape(shape)


def discriminator_block_forward(x: jax.Array, *, materialize: bool = False) -> jax.Array:
    """Forward of DiscriminatorBlock (empty nn.Sequential) == identity.

    The optimal path (per the perf review) is a pure no-op: return x with zero
    HBM traffic.  Set `materialize=True` to force a real HBM-resident copy via
    the Pallas kernel (e.g. if a fresh buffer is required downstream).
    """
    if not materialize:
        return x
    return discriminator_block_pallas(x)


if __name__ == "__main__":
    key = jax.random.PRNGKey(0)
    # Small NCHW shape consistent with a discriminator block input.
    x = jax.random.normal(key, (2, 4, 16, 16), dtype=jnp.float32)

    # Optimal (no-op) path.
    y_fast = discriminator_block_forward(x)
    y_fast = jax.block_until_ready(y_fast)

    # Pallas copy-kernel path (exercises the kernel).
    y_kernel = discriminator_block_forward(x, materialize=True)
    y_kernel = jax.block_until_ready(y_kernel)

    assert y_fast.shape == x.shape and y_fast.dtype == x.dtype
    assert y_kernel.shape == x.shape and y_kernel.dtype == x.dtype
    assert bool(jnp.all(y_fast == x))
    assert bool(jnp.all(y_kernel == x))  # identity semantics of empty nn.Sequential

    print("KERNEL_OK")
</pallas_src>

<mosaic_0001>
module attributes {stable_mosaic.version = 11 : i64} {
  func.func @_copy_kernel(%arg0: i32, %arg1: memref<1x2048xf32, #tpu.memory_space<vmem>>, %arg2: memref<1x2048xf32, #tpu.memory_space<vmem>>) attributes {dimension_semantics = [#tpu.dimension_semantics<parallel>], iteration_bounds = array<i64: 1>, scalar_prefetch = 0 : i64, scratch_operands = 0 : i64, tpu.core_type = #tpu.core_type<tc>, window_params = [{transform_indices = @transform_0, window_bounds = array<i64: 1, 2048>}, {transform_indices = @transform_1, window_bounds = array<i64: 1, 2048>}]} {
    %c0 = arith.constant 0 : index
    %c0_0 = arith.constant 0 : index
    %0 = vector.load %arg1[%c0, %c0_0] : memref<1x2048xf32, #tpu.memory_space<vmem>>, vector<1x2048xf32>
    %c0_1 = arith.constant 0 : index
    %c0_2 = arith.constant 0 : index
    %1 = vector.load %arg2[%c0_1, %c0_2] : memref<1x2048xf32, #tpu.memory_space<vmem>>, vector<1x2048xf32>
    tpu.vector_store %arg2[%c0_1, %c0_2], %0 {strides = array<i32>} : memref<1x2048xf32, #tpu.memory_space<vmem>>, vector<1x2048xf32>,
    return
  }
  func.func @transform_0(%arg0: i32) -> (i32, i32) {
    %c0_i32 = arith.constant 0 : i32
    %c0_i32_0 = arith.constant 0 : i32
    return %arg0, %c0_i32 : i32, i32
  }
  func.func @transform_1(%arg0: i32) -> (i32, i32) {
    %c0_i32 = arith.constant 0 : i32
    %c0_i32_0 = arith.constant 0 : i32
    return %arg0, %c0_i32 : i32, i32
  }
}

</mosaic_0001>

<llo_original>
// kernel: tpu_custom_call.1
$region0: #{tpu_custom_call.1}
  #allocation0 [shape = 'u32[]', space=smem, size = 0x4, offset = 0x4, fixed_abs, tag = 'smem constant byte address 0x4 - core index']
  #allocation1 [shape = 'u32[144,128]{1,0:T(1,128)}', space=vmem, size = 0x12000, scoped, tag = 'internal scratch']
  %s0 = inlined_call_operand.hbm [shape: f32[1,2048], index: 0, kind: input, shape index: {}, may-alias: {0,1}]
  %s1 = inlined_call_operand.hbm [shape: f32[1,2048], index: 1, kind: output, shape index: {}, may-alias: {0,1}]
  %s2 = sld [smem:[#allocation0]]
  $region18: #{tpu_custom_call.1} parent=0
    _
  %s4 = ssub.s32 1, %s2
  %s5 = scalar_select 0, %s4, %s2
  $region1: #{tpu_custom_call.1} parent=0
    #allocation2 [shape = 'u8[8192]{0}', space=vmem, size = 0x2000, scoped, tag = 'input window, operand 0, single buffered']
    #allocation3 [shape = 's32[1]{0}', space=sflag, size = 0x4, scoped, tag = 'scoped memory for tpu_custom_call.1']
    #allocation4 [shape = 's32[1]{0}', space=sflag, size = 0x4, scoped, tag = 'scoped memory for tpu_custom_call.1']
    #allocation5 [shape = 'u8[8192]{0}', space=vmem, size = 0x2000, scoped, tag = 'output window, operand 0, single buffered']
    %6 = vsyncpa [#allocation3], 0
    %7 = vsyncpa [#allocation4], 0
    // Predicated region
    $region2: #{tpu_custom_call.1} parent=1 // pred_check
      _
    $region3: #{tpu_custom_call.1} parent=1 // pred_check_branch
      %9 = sbr.rel (0) target = $region5
    $region4: #{tpu_custom_call.1} parent=1 // pred_region
      %s11 = ssub.s32 256, 256
      %12 = vsyncadd [#allocation3], %s11
      %s14 = sshll.u32 [#allocation2], 4
      %s15 = int_to_ptr.vmem [resolvable:$true] %s14
      %17 = dma.hbm_to_vmem [thread:$0]  %s0, 256, %s15, [#allocation3]
    $region5: #{tpu_custom_call.1} parent=1 // pred_fallthru
      _
    // Predicated region
    $region6: #{tpu_custom_call.1} parent=1 // pred_check
      _
    $region7: #{tpu_custom_call.1} parent=1 // pred_check_branch
      %19 = sbr.rel (0) target = $region9
    $region8: #{tpu_custom_call.1} parent=1 // pred_region
      %20 = dma.done [#allocation3], 256
    $region9: #{tpu_custom_call.1} parent=1 // pred_fallthru
      _
    %v21 = vld [vmem:[#allocation2] sm:$0xff]
    %v22 = vld [vmem:[#allocation2 + $0x8] sm:$0xff]
    %23 = vst [vmem:[#allocation5] sm:$0xff] %v21
    %24 = vst [vmem:[#allocation5 + $0x8] sm:$0xff] %v22
    // Predicated region
    $region10: #{tpu_custom_call.1} parent=1 // pred_check
      _
    $region11: #{tpu_custom_call.1} parent=1 // pred_check_branch
      %26 = sbr.rel (0) target = $region13
    $region12: #{tpu_custom_call.1} parent=1 // pred_region
      %s28 = ssub.s32 256, 256
      %29 = vsyncadd [#allocation4], %s28
      %s31 = sshll.u32 [#allocation5], 4
      %s32 = int_to_ptr.vmem [resolvable:$true] %s31
      %34 = dma.vmem_to_hbm [thread:$0]  %s32, 256, %s1, [#allocation4]
    $region13: #{tpu_custom_call.1} parent=1 // pred_fallthru
      _
    // Predicated region
    $region14: #{tpu_custom_call.1} parent=1 // pred_check
      _
    $region15: #{tpu_custom_call.1} parent=1 // pred_check_branch
      %36 = sbr.rel (0) target = $region17
    $region16: #{tpu_custom_call.1} parent=1 // pred_region
      %37 = dma.done [#allocation4], 256
    $region17: #{tpu_custom_call.1} parent=1 // pred_fallthru
      _
    %38 = vsyncpa [#allocation3], 1
    %39 = vsyncpa [#allocation4], 1

</llo_original>
